<compile_context>
chip_gen: v6e
topology: v6e:2x2x1
jax: 0.10.0
libtpu: 0.0.40
codegen_flags: <defaults>
</compile_context>

<pallas_src>
import functools
import math

import jax
import jax.numpy as jnp
from jax.experimental import pallas as pl
from jax.experimental.pallas import tpu as pltpu


def _mean_dim1_single_kernel(x_ref, o_ref, *, inv_c):
    """C fits in one grid step: write the mean directly, no scratch."""
    s = jnp.sum(x_ref[...], axis=1, dtype=jnp.float32)
    o_ref[...] = (s * inv_c).astype(o_ref.dtype)


def _mean_dim1_acc_kernel(x_ref, o_ref, acc_ref, *, inv_c):
    """Accumulate the channel-axis sum of one (TB, TC, TL) tile.

    acc_ref is an f32 VMEM scratch resident across the C-reduction grid axis;
    the (TB, TL) output tile is written once on the final C step.
    """
    c_step = pl.program_id(2)

    @pl.when(c_step == 0)
    def _():
        acc_ref[...] = jnp.zeros_like(acc_ref)

    # Fuse the f32 upcast into the reduction (no materialized cast tile).
    acc_ref[...] += jnp.sum(x_ref[...], axis=1, dtype=jnp.float32)

    @pl.when(c_step == pl.num_programs(2) - 1)
    def _():
        o_ref[...] = (acc_ref[...] * inv_c).astype(o_ref.dtype)


# Keep the double-buffered working set well under the smallest scoped-VMEM
# default (v5e: 16 MiB) so the same tiling compiles on v5e / v6e / v7x.
_VMEM_BUDGET = 12 * 1024 * 1024


def _pick_tiles(B, C, L, in_bytes, out_bytes):
    # Channel (reduction) tile: only tile when C is large, and only with an
    # exact divisor (multiple of 8) so the accumulated sum is exact and the
    # last-two-dims (8, 128) constraint holds.
    TC = C
    if C > 1024:
        for cand in range(1024, 7, -8):
            if C % cand == 0:
                TC = cand
                break

    def footprint(tb, tl):
        # 2x input tile + 2x output tile (double buffered) + f32 accumulator.
        return (2 * tb * TC * tl * in_bytes
                + 2 * tb * tl * out_bytes
                + tb * tl * 4)

    # Minimal batch tile: full B when small, else one full sublane group.
    TB = B if B <= 8 else 8

    # Lane (last-dim) tile: full L when the budget allows (biggest tiles win
    # for a bandwidth-bound reduction), else the largest 128-aligned chunk.
    if footprint(TB, L) <= _VMEM_BUDGET:
        TL = L
    else:
        per_lane = max(1, footprint(TB, 1))
        TL = max(128, (_VMEM_BUDGET // per_lane) // 128 * 128)
        TL = min(TL, max(128, (L // 128) * 128))
        while footprint(TB, TL) > _VMEM_BUDGET and TL > 128:
            TL = max(128, (TL // 2) // 128 * 128)

    # Grow the batch tile (multiples of 8) while the budget allows.
    if B > 8:
        for cand in (128, 64, 32, 16):
            if footprint(cand, TL) <= _VMEM_BUDGET:
                TB = cand
                break

    return TB, TC, TL


def avg_pool_1d(x):
    """torch.mean(x, dim=1) for x.ndim > 2, as a Pallas TPU kernel."""
    assert x.ndim > 2
    B, C = x.shape[0], x.shape[1]
    spatial = x.shape[2:]
    L = math.prod(spatial)
    x3 = x.reshape(B, C, L)

    itemsize = jnp.dtype(x.dtype).itemsize
    TB, TC, TL = _pick_tiles(B, C, L, itemsize, itemsize)

    c_steps = pl.cdiv(C, TC)
    grid = (pl.cdiv(B, TB), pl.cdiv(L, TL), c_steps)
    inv_c = float(1.0 / C)

    if c_steps == 1:
        kernel = functools.partial(_mean_dim1_single_kernel, inv_c=inv_c)
        scratch_shapes = []
    else:
        kernel = functools.partial(_mean_dim1_acc_kernel, inv_c=inv_c)
        scratch_shapes = [pltpu.VMEM((TB, TL), jnp.float32)]

    # NOTE: for problems smaller than one (8,128) output tile, plain XLA
    # (jnp.mean) would beat the fixed pallas_call overhead; we always run the
    # kernel here so the TPU path is exercised.
    out = pl.pallas_call(
        kernel,
        out_shape=jax.ShapeDtypeStruct((B, L), x.dtype),
        grid_spec=pltpu.PrefetchScalarGridSpec(
            num_scalar_prefetch=0,
            grid=grid,
            in_specs=[pl.BlockSpec((TB, TC, TL), lambda b, l, c: (b, c, l))],
            out_specs=pl.BlockSpec((TB, TL), lambda b, l, c: (b, l)),
            scratch_shapes=scratch_shapes,
        ),
        compiler_params=pltpu.CompilerParams(
            dimension_semantics=("parallel", "parallel", "arbitrary")),
        cost_estimate=pl.CostEstimate(
            flops=B * C * L,
            transcendentals=0,
            bytes_accessed=B * C * L * itemsize + B * L * itemsize),
    )(x3)

    return out.reshape((B,) + spatial)


if __name__ == "__main__":
    key = jax.random.PRNGKey(0)
    B, C, H, W = 2, 4, 16, 16
    x = jax.random.normal(key, (B, C, H, W), dtype=jnp.float32)

    out = avg_pool_1d(x)
    out = jax.block_until_ready(out)

    # Reference: same semantics as torch.mean(x, dim=1).
    ref = jnp.mean(x, axis=1)
    assert out.shape == (B, H, W)
    assert jnp.allclose(out, ref, atol=1e-5, rtol=1e-5)

    print("KERNEL_OK")
</pallas_src>

<mosaic_0001>
module attributes {stable_mosaic.version = 11 : i64} {
  func.func @_mean_dim1_single_kernel(%arg0: i32, %arg1: i32, %arg2: i32, %arg3: memref<2x4x256xf32, #tpu.memory_space<vmem>>, %arg4: memref<2x256xf32, #tpu.memory_space<vmem>>) attributes {dimension_semantics = [#tpu.dimension_semantics<parallel>, #tpu.dimension_semantics<parallel>, #tpu.dimension_semantics<arbitrary>], iteration_bounds = array<i64: 1, 1, 1>, scalar_prefetch = 0 : i64, scratch_operands = 0 : i64, tpu.core_type = #tpu.core_type<tc>, window_params = [{transform_indices = @transform_0, window_bounds = array<i64: 2, 4, 256>}, {transform_indices = @transform_1, window_bounds = array<i64: 2, 256>}]} {
    %c0 = arith.constant 0 : index
    %c0_0 = arith.constant 0 : index
    %c0_1 = arith.constant 0 : index
    %0 = vector.load %arg3[%c0, %c0_0, %c0_1] : memref<2x4x256xf32, #tpu.memory_space<vmem>>, vector<2x4x256xf32>
    %cst = arith.constant dense<0.000000e+00> : vector<2x256xf32>
    %1 = vector.multi_reduction <add>, %0, %cst [1] : vector<2x4x256xf32> to vector<2x256xf32>
    %cst_2 = arith.constant 2.500000e-01 : f32
    %2 = vector.broadcast %cst_2 : f32 to vector<2x256xf32>
    %3 = arith.mulf %1, %2 : vector<2x256xf32>
    %c0_3 = arith.constant 0 : index
    %c0_4 = arith.constant 0 : index
    %4 = vector.load %arg4[%c0_3, %c0_4] : memref<2x256xf32, #tpu.memory_space<vmem>>, vector<2x256xf32>
    tpu.vector_store %arg4[%c0_3, %c0_4], %3 {strides = array<i32>} : memref<2x256xf32, #tpu.memory_space<vmem>>, vector<2x256xf32>,
    return
  }
  func.func @transform_0(%arg0: i32, %arg1: i32, %arg2: i32) -> (i32, i32, i32) {
    %c0_i32 = arith.constant 0 : i32
    return %arg0, %arg2, %arg1 : i32, i32, i32
  }
  func.func @transform_1(%arg0: i32, %arg1: i32, %arg2: i32) -> (i32, i32) {
    %c0_i32 = arith.constant 0 : i32
    return %arg0, %arg1 : i32, i32
  }
}

</mosaic_0001>

<llo_original>
// kernel: tpu_custom_call.1
$region0: #{tpu_custom_call.1}
  #allocation0 [shape = 'u32[]', space=smem, size = 0x4, offset = 0x4, fixed_abs, tag = 'smem constant byte address 0x4 - core index']
  #allocation1 [shape = 'u32[144,128]{1,0:T(1,128)}', space=vmem, size = 0x12000, scoped, tag = 'internal scratch']
  %s0 = inlined_call_operand.hbm [shape: f32[2,4,256], index: 0, kind: input, shape index: {}]
  %s1 = inlined_call_operand.hbm [shape: f32[2,256], index: 1, kind: output, shape index: {}]
  %s2 = sld [smem:[#allocation0]]
  $region18: #{tpu_custom_call.1} parent=0
    _
  %s4 = ssub.s32 1, %s2
  %s5 = scalar_select 0, %s4, %s2
  $region1: #{tpu_custom_call.1} parent=0
    #allocation2 [shape = 'u8[8192]{0}', space=vmem, size = 0x2000, scoped, tag = 'input window, operand 0, single buffered']
    #allocation3 [shape = 's32[1]{0}', space=sflag, size = 0x4, scoped, tag = 'scoped memory for tpu_custom_call.1']
    #allocation4 [shape = 's32[1]{0}', space=sflag, size = 0x4, scoped, tag = 'scoped memory for tpu_custom_call.1']
    #allocation5 [shape = 'u8[2048]{0}', space=vmem, size = 0x800, scoped, tag = 'output window, operand 0, single buffered']
    %6 = vsyncpa [#allocation3], 0
    %7 = vsyncpa [#allocation4], 0
    // Predicated region
    $region2: #{tpu_custom_call.1} parent=1 // pred_check
      _
    $region3: #{tpu_custom_call.1} parent=1 // pred_check_branch
      %9 = sbr.rel (0) target = $region5
    $region4: #{tpu_custom_call.1} parent=1 // pred_region
      %s11 = ssub.s32 256, 256
      %12 = vsyncadd [#allocation3], %s11
      %s13 = sshll.u32 [#allocation2], 4
      %s14 = int_to_ptr.vmem [resolvable:$true] %s13
      %19 = dma.hbm_to_vmem [thread:$0]  %s0, 256, %s14, [#allocation3], 128, 128, 8
    $region5: #{tpu_custom_call.1} parent=1 // pred_fallthru
      _
    // Predicated region
    $region6: #{tpu_custom_call.1} parent=1 // pred_check
      _
    $region7: #{tpu_custom_call.1} parent=1 // pred_check_branch
      %21 = sbr.rel (0) target = $region9
    $region8: #{tpu_custom_call.1} parent=1 // pred_region
      %22 = dma.done [#allocation3], 256
    $region9: #{tpu_custom_call.1} parent=1 // pred_fallthru
      _
    %v23 = vld [vmem:[#allocation2] sm:$0xff]
    %v24 = vld [vmem:[#allocation2 + $0x8] sm:$0xff]
    %v27 = vcombine.high %v23, %v23
    %v28 = vcombine.high %v24, %v24
    %vm31 = vcmask 1043456
    %v32 = vsel %vm31, %v23, 0.0
    %v33 = vrot.slane %v32, 4
    %v34 = vadd.f32 %v32, %v33
    %v35 = vrot.slane %v34, 2
    %v36 = vadd.f32 %v34, %v35
    %v37 = vrot.slane %v36, 1
    %v38 = vadd.f32 %v36, %v37
    %v39 = vsel %vm31, %v27, 0.0
    %v40 = vrot.slane %v39, 4
    %v41 = vadd.f32 %v39, %v40
    %v42 = vrot.slane %v41, 2
    %v43 = vadd.f32 %v41, %v42
    %v44 = vrot.slane %v43, 1
    %v45 = vadd.f32 %v43, %v44
    %v46 = vsel %vm31, %v24, 0.0
    %v47 = vrot.slane %v46, 4
    %v48 = vadd.f32 %v46, %v47
    %v49 = vrot.slane %v48, 2
    %v50 = vadd.f32 %v48, %v49
    %v51 = vrot.slane %v50, 1
    %v52 = vadd.f32 %v50, %v51
    %v53 = vsel %vm31, %v28, 0.0
    %v54 = vrot.slane %v53, 4
    %v55 = vadd.f32 %v53, %v54
    %v56 = vrot.slane %v55, 2
    %v57 = vadd.f32 %v55, %v56
    %v58 = vrot.slane %v57, 1
    %v59 = vadd.f32 %v57, %v58
    %v60 = vmul.f32 %v38, 0.25
    %v61 = vmul.f32 %v45, 0.25
    %v62 = vmul.f32 %v52, 0.25
    %v63 = vmul.f32 %v59, 0.25
    %v68 = vcombine.low %v60, %v61
    %v70 = vunpack.c.l.s4 1983009808
    %v71 = vunpack.c.0.s8 %v70
    %v72 = vlaneseq
    %v73 = vshrl.u32 %v72, 7
    %v74 = vsub.s32 %v71, %v73
    %v75 = vrot.slane %v68, %v74
    %v76 = vcombine.low %v62, %v63
    %v78 = vunpack.c.l.s4 1983009808
    %v79 = vunpack.c.0.s8 %v78
    %v80 = vlaneseq
    %v81 = vshrl.u32 %v80, 7
    %v82 = vsub.s32 %v79, %v81
    %v83 = vrot.slane %v76, %v82
    %vm84 = vcmask 1044484
    %v85 = vsel %vm84, %v75, %v75
    %vm86 = vcmask 1046534
    %v87 = vsel %vm86, %v75, %v85
    %v88 = vrot.slane %v83, 7
    %vm89 = vcmask 1041409
    %v90 = vsel %vm89, %v88, %v87
    %vm91 = vcmask 1043459
    %v92 = vsel %vm91, %v88, %v90
    %vm93 = vcmask 1045509
    %v94 = vsel %vm93, %v88, %v92
    %vm95 = vcmask 1047559
    %v96 = vsel %vm95, %v88, %v94
    %98 = vst [vmem:[#allocation5] sm:$0xf] %v96
    // Predicated region
    $region10: #{tpu_custom_call.1} parent=1 // pred_check
      _
    $region11: #{tpu_custom_call.1} parent=1 // pred_check_branch
      %100 = sbr.rel (0) target = $region13
    $region12: #{tpu_custom_call.1} parent=1 // pred_region
      %s102 = ssub.s32 64, 64
      %103 = vsyncadd [#allocation4], %s102
      %s105 = sshll.u32 [#allocation5], 4
      %s106 = int_to_ptr.vmem [resolvable:$true] %s105
      %108 = dma.vmem_to_hbm [thread:$0]  %s106, 64, %s1, [#allocation4]
    $region13: #{tpu_custom_call.1} parent=1 // pred_fallthru
      _
    // Predicated region
    $region14: #{tpu_custom_call.1} parent=1 // pred_check
      _
    $region15: #{tpu_custom_call.1} parent=1 // pred_check_branch
      %110 = sbr.rel (0) target = $region17
    $region16: #{tpu_custom_call.1} parent=1 // pred_region
      %111 = dma.done [#allocation4], 64
    $region17: #{tpu_custom_call.1} parent=1 // pred_fallthru
      _
    %112 = vsyncpa [#allocation3], 1
    %113 = vsyncpa [#allocation4], 1

</llo_original>
